<compile_context>
chip_gen: v7x
topology: tpu7x:2x2x1
jax: 0.10.0
libtpu: 0.0.40
codegen_flags: <defaults>
</compile_context>

<pallas_src>
import functools

import jax
import jax.numpy as jnp
from jax.experimental import pallas as pl
from jax.experimental.pallas import tpu as pltpu


K_IN = 784          # input features
H = 128             # hidden width
N_OUT = 10          # output classes
N_PAD = 128         # second-layer weight columns padded to one full lane group


def _round_up(n, m):
    return ((n + m - 1) // m) * m


def mlp_mnist_kernel(seed_ref, x_ref, w1_ref, b1_ref, w2_ref, b2_ref, out_ref,
                     *, dropout_p, n_out, tile_rows):
    # ---- Linear(784 -> 128): f32 x read once, bf16 MXU, f32 accumulation ----
    x = x_ref[...].astype(jnp.bfloat16)
    h = jnp.dot(x, w1_ref[...], preferred_element_type=jnp.float32)  # [TB,128]
    h = h + b1_ref[...]

    # ---- Dropout (p = dropout_p, training mode, inverted scaling) -----------
    # Stateless hash of (seed, global element index) -> uniform bits.  Uses
    # only plain integer VPU ops (works on Mosaic and in interpret mode).
    if dropout_p > 0.0:
        shape = h.shape
        row = jax.lax.broadcasted_iota(jnp.int32, shape, 0)
        col = jax.lax.broadcasted_iota(jnp.int32, shape, 1)
        gidx = (pl.program_id(0) * tile_rows + row) * shape[1] + col
        s = seed_ref[0].astype(jnp.uint32)
        hsh = gidx.astype(jnp.uint32) * jnp.uint32(0x9E3779B1)
        hsh = hsh + s * jnp.uint32(0x7FEFFFFD)      # large-odd seed stride
        # murmur3 fmix32 finalizer
        hsh = hsh ^ (hsh >> 16)
        hsh = hsh * jnp.uint32(0x85EBCA6B)
        hsh = hsh ^ (hsh >> 13)
        hsh = hsh * jnp.uint32(0xC2B2AE35)
        hsh = hsh ^ (hsh >> 16)
        # Top 24 bits -> uniform in [0, 2^24); keep with probability (1 - p).
        u24 = (hsh >> 8).astype(jnp.int32)
        thresh = jnp.int32(min(int(round(dropout_p * (1 << 24))), (1 << 24) - 1))
        keep = u24 >= thresh
        scale = jnp.float32(1.0 / (1.0 - dropout_p))
        h = jnp.where(keep, h * scale, jnp.float32(0.0))

    # ---- ReLU ----------------------------------------------------------------
    h = jnp.maximum(h, 0.0)

    # ---- Linear(128 -> 10), columns padded to 128 lanes ----------------------
    # Padded w2 columns are zero and padded b2 entries are -1e30, so padded
    # logits vanish in the softmax without any iota/compare/select here.
    logits = jnp.dot(h.astype(jnp.bfloat16), w2_ref[...],
                     preferred_element_type=jnp.float32)             # [TB,128]
    logits = logits + b2_ref[...]

    # ---- Softmax along dim=1 (exact normalization) ---------------------------
    m = jnp.max(logits, axis=-1, keepdims=True)
    e = jnp.exp(logits - m)
    probs = e / jnp.sum(e, axis=-1, keepdims=True)

    out_ref[...] = probs[:, :n_out].astype(out_ref.dtype)


def mlp_mnist_forward(x, params, seed, dropout_p=0.5, batch_tile=1024):
    """x: [B, 1, 28, 28] or [B, 784]. Returns softmax probabilities [B, 10]."""
    assert 0.0 <= dropout_p < 1.0, "dropout_p must be in [0, 1)"
    w1, b1, w2, b2 = params
    x2d = x.reshape(-1, K_IN).astype(jnp.float32)
    B = x2d.shape[0]

    # Batch tile: multiple of 8 sublanes, sized so the grid has >=2 tiles when
    # possible (keeps both v7x TensorCores busy), capped at `batch_tile`
    # (TB=1024 with double-buffered f32 x tiles stays under v5e's 16 MiB
    # scoped-VMEM default).
    TB = min(batch_tile, _round_up(max(1, (B + 1) // 2), 8))
    if TB > B:
        TB = B                      # block == full dim is always legal
    grid = pl.cdiv(B, TB)           # Pallas masks the ragged last tile

    # Small host-side weight prep (weights stay resident in VMEM via constant
    # index_maps).  x is passed unpadded and un-cast: single HBM read.
    w1_b = w1.reshape(K_IN, H).astype(jnp.bfloat16)
    b1_b = b1.reshape(1, H).astype(jnp.float32)
    w2_p = jnp.zeros((H, N_PAD), jnp.bfloat16).at[:, :N_OUT].set(
        w2.reshape(H, N_OUT).astype(jnp.bfloat16))
    b2_p = jnp.full((1, N_PAD), -1e30, jnp.float32).at[:, :N_OUT].set(
        b2.reshape(1, N_OUT).astype(jnp.float32))

    seed_arr = jnp.asarray([seed], dtype=jnp.int32)

    kernel = functools.partial(mlp_mnist_kernel, dropout_p=dropout_p,
                               n_out=N_OUT, tile_rows=TB)

    return pl.pallas_call(
        kernel,
        out_shape=jax.ShapeDtypeStruct((B, N_OUT), jnp.float32),
        grid_spec=pltpu.PrefetchScalarGridSpec(
            num_scalar_prefetch=1,                        # seed -> SMEM
            grid=(grid,),
            in_specs=[
                # x: streamed per batch tile (double-buffered by Pallas)
                pl.BlockSpec((TB, K_IN), lambda i, seed: (i, 0)),
                # weights/biases: constant block index -> stay resident
                pl.BlockSpec((K_IN, H), lambda i, seed: (0, 0)),
                pl.BlockSpec((1, H), lambda i, seed: (0, 0)),
                pl.BlockSpec((H, N_PAD), lambda i, seed: (0, 0)),
                pl.BlockSpec((1, N_PAD), lambda i, seed: (0, 0)),
            ],
            out_specs=pl.BlockSpec((TB, N_OUT), lambda i, seed: (i, 0)),
        ),
        compiler_params=pltpu.CompilerParams(
            dimension_semantics=("parallel",),            # megacore / v7x 2-TC
        ),
    )(seed_arr, x2d, w1_b, b1_b, w2_p, b2_p)


def init_params(key):
    """Mimics nn.Linear defaults (uniform +/- 1/sqrt(fan_in)).
    Weights stored as [in, out] (transposed vs. PyTorch) for the kernel."""
    k1, k2, k3, k4 = jax.random.split(key, 4)
    bound1 = 1.0 / jnp.sqrt(784.0)
    w1 = jax.random.uniform(k1, (784, 128), jnp.float32, -bound1, bound1)
    b1 = jax.random.uniform(k2, (1, 128), jnp.float32, -bound1, bound1)
    bound2 = 1.0 / jnp.sqrt(128.0)
    w2 = jax.random.uniform(k3, (128, 10), jnp.float32, -bound2, bound2)
    b2 = jax.random.uniform(k4, (1, 10), jnp.float32, -bound2, bound2)
    return w1, b1, w2, b2


def _reference_forward(x, params):
    """Pure-JAX f32 reference with dropout disabled (deterministic check)."""
    w1, b1, w2, b2 = params
    x2d = x.reshape(-1, K_IN).astype(jnp.float32)
    h = x2d @ w1.reshape(K_IN, H) + b1.reshape(1, H)
    h = jnp.maximum(h, 0.0)
    logits = h @ w2.reshape(H, N_OUT) + b2.reshape(1, N_OUT)
    return jax.nn.softmax(logits, axis=-1)


if __name__ == "__main__":
    key = jax.random.PRNGKey(0)
    k_x, k_p = jax.random.split(key)

    # MNIST-shaped input at small batch.
    x = jax.random.normal(k_x, (2, 1, 28, 28), dtype=jnp.float32)
    params = init_params(k_p)

    # Deterministic path (dropout disabled) vs. pure-JAX reference.
    out_eval = jax.block_until_ready(
        mlp_mnist_forward(x, params, seed=0, dropout_p=0.0))
    ref = _reference_forward(x, params)
    assert out_eval.shape == (2, 10)
    assert jnp.allclose(out_eval, ref, atol=2e-2)

    # Training-mode path (dropout p=0.5, matching F.dropout defaults).
    # TODO(synk): dropout mask uses an in-kernel stateless hash, not torch's
    # RNG stream; only the distribution (not the exact mask) matches PyTorch.
    out = jax.block_until_ready(mlp_mnist_forward(x, params, seed=0))
    assert out.shape == (2, 10)
    assert bool(jnp.all(jnp.isfinite(out)))
    assert bool(jnp.all(out >= 0.0))
    assert jnp.allclose(jnp.sum(out, axis=-1), 1.0, atol=1e-3)
    print("KERNEL_OK")
</pallas_src>

<mosaic_0001>
module attributes {stable_mosaic.version = 11 : i64} {
  func.func @mlp_mnist_kernel(%arg0: i32, %arg1: memref<1xi32, #tpu.memory_space<smem>>, %arg2: memref<2x784xf32, #tpu.memory_space<vmem>>, %arg3: memref<784x128xbf16, #tpu.memory_space<vmem>>, %arg4: memref<1x128xf32, #tpu.memory_space<vmem>>, %arg5: memref<128x128xbf16, #tpu.memory_space<vmem>>, %arg6: memref<1x128xf32, #tpu.memory_space<vmem>>, %arg7: memref<2x10xf32, #tpu.memory_space<vmem>>) attributes {dimension_semantics = [#tpu.dimension_semantics<parallel>], iteration_bounds = array<i64: 1>, scalar_prefetch = 1 : i64, scratch_operands = 0 : i64, tpu.core_type = #tpu.core_type<tc>, window_params = [{transform_indices = @transform_0, window_bounds = array<i64: 2, 784>}, {pipeline_mode = #tpu.pipeline_mode<synchronous>, transform_indices = @transform_1, window_bounds = array<i64: 784, 128>}, {pipeline_mode = #tpu.pipeline_mode<synchronous>, transform_indices = @transform_2, window_bounds = array<i64: 1, 128>}, {pipeline_mode = #tpu.pipeline_mode<synchronous>, transform_indices = @transform_3, window_bounds = array<i64: 128, 128>}, {pipeline_mode = #tpu.pipeline_mode<synchronous>, transform_indices = @transform_4, window_bounds = array<i64: 1, 128>}, {transform_indices = @transform_5, window_bounds = array<i64: 2, 10>}]} {
    %c0 = arith.constant 0 : index
    %c0_0 = arith.constant 0 : index
    %0 = vector.load %arg2[%c0, %c0_0] : memref<2x784xf32, #tpu.memory_space<vmem>>, vector<2x784xf32>
    %1 = arith.truncf %0 : vector<2x784xf32> to vector<2x784xbf16>
    %c0_1 = arith.constant 0 : index
    %c0_2 = arith.constant 0 : index
    %2 = vector.load %arg3[%c0_1, %c0_2] : memref<784x128xbf16, #tpu.memory_space<vmem>>, vector<784x128xbf16>
    %cst = arith.constant dense<0.000000e+00> : vector<2x128xf32>
    %3 = tpu.matmul %1, %2, %cst {dimension_numbers = #tpu.dot_dimension_numbers<[1], [0], [0], [1], [0, 0, 1, 1], [], []>} : vector<2x784xbf16>, vector<784x128xbf16>, vector<2x128xf32> -> vector<2x128xf32>
    %c0_3 = arith.constant 0 : index
    %c0_4 = arith.constant 0 : index
    %4 = vector.load %arg4[%c0_3, %c0_4] : memref<1x128xf32, #tpu.memory_space<vmem>>, vector<1x128xf32>
    %5 = vector.broadcast %4 : vector<1x128xf32> to vector<2x128xf32>
    %6 = arith.addf %3, %5 : vector<2x128xf32>
    %cst_5 = arith.constant 0.000000e+00 : f32
    %7 = vector.broadcast %cst_5 : f32 to vector<2x128xf32>
    %8 = arith.maximumf %6, %7 : vector<2x128xf32>
    %9 = arith.truncf %8 : vector<2x128xf32> to vector<2x128xbf16>
    %c0_6 = arith.constant 0 : index
    %c0_7 = arith.constant 0 : index
    %10 = vector.load %arg5[%c0_6, %c0_7] : memref<128x128xbf16, #tpu.memory_space<vmem>>, vector<128x128xbf16>
    %cst_8 = arith.constant dense<0.000000e+00> : vector<2x128xf32>
    %11 = tpu.matmul %9, %10, %cst_8 {dimension_numbers = #tpu.dot_dimension_numbers<[1], [0], [0], [1], [0, 0, 1, 1], [], []>} : vector<2x128xbf16>, vector<128x128xbf16>, vector<2x128xf32> -> vector<2x128xf32>
    %c0_9 = arith.constant 0 : index
    %c0_10 = arith.constant 0 : index
    %12 = vector.load %arg6[%c0_9, %c0_10] : memref<1x128xf32, #tpu.memory_space<vmem>>, vector<1x128xf32>
    %13 = vector.broadcast %12 : vector<1x128xf32> to vector<2x128xf32>
    %14 = arith.addf %11, %13 : vector<2x128xf32>
    %cst_11 = arith.constant dense<0xFF800000> : vector<2xf32>
    %15 = vector.multi_reduction <maximumf>, %14, %cst_11 [1] : vector<2x128xf32> to vector<2xf32>
    %16 = vector.shape_cast %15 : vector<2xf32> to vector<2x1xf32>
    %17 = vector.broadcast %16 : vector<2x1xf32> to vector<2x128xf32>
    %18 = arith.subf %14, %17 : vector<2x128xf32>
    %19 = math.exp %18 : vector<2x128xf32>
    %cst_12 = arith.constant dense<0.000000e+00> : vector<2xf32>
    %20 = vector.multi_reduction <add>, %19, %cst_12 [1] : vector<2x128xf32> to vector<2xf32>
    %21 = vector.shape_cast %20 : vector<2xf32> to vector<2x1xf32>
    %22 = vector.broadcast %21 : vector<2x1xf32> to vector<2x128xf32>
    %23 = arith.divf %19, %22 : vector<2x128xf32>
    %24 = vector.extract_strided_slice %23 {offsets = [0, 0], sizes = [2, 10], strides = [1, 1]} : vector<2x128xf32> to vector<2x10xf32>
    %c0_13 = arith.constant 0 : index
    %c0_14 = arith.constant 0 : index
    %25 = vector.load %arg7[%c0_13, %c0_14] : memref<2x10xf32, #tpu.memory_space<vmem>>, vector<2x10xf32>
    tpu.vector_store %arg7[%c0_13, %c0_14], %24 {strides = array<i32>} : memref<2x10xf32, #tpu.memory_space<vmem>>, vector<2x10xf32>,
    return
  }
  func.func @transform_0(%arg0: i32, %arg1: memref<1xi32, #tpu.memory_space<smem>>) -> (i32, i32) {
    %c0_i32 = arith.constant 0 : i32
    %c0_i32_0 = arith.constant 0 : i32
    return %arg0, %c0_i32 : i32, i32
  }
  func.func @transform_1(%arg0: i32, %arg1: memref<1xi32, #tpu.memory_space<smem>>) -> (i32, i32) {
    %c0_i32 = arith.constant 0 : i32
    %c0_i32_0 = arith.constant 0 : i32
    %c0_i32_1 = arith.constant 0 : i32
    return %c0_i32, %c0_i32_0 : i32, i32
  }
  func.func @transform_2(%arg0: i32, %arg1: memref<1xi32, #tpu.memory_space<smem>>) -> (i32, i32) {
    %c0_i32 = arith.constant 0 : i32
    %c0_i32_0 = arith.constant 0 : i32
    %c0_i32_1 = arith.constant 0 : i32
    return %c0_i32, %c0_i32_0 : i32, i32
  }
  func.func @transform_3(%arg0: i32, %arg1: memref<1xi32, #tpu.memory_space<smem>>) -> (i32, i32) {
    %c0_i32 = arith.constant 0 : i32
    %c0_i32_0 = arith.constant 0 : i32
    %c0_i32_1 = arith.constant 0 : i32
    return %c0_i32, %c0_i32_0 : i32, i32
  }
  func.func @transform_4(%arg0: i32, %arg1: memref<1xi32, #tpu.memory_space<smem>>) -> (i32, i32) {
    %c0_i32 = arith.constant 0 : i32
    %c0_i32_0 = arith.constant 0 : i32
    %c0_i32_1 = arith.constant 0 : i32
    return %c0_i32, %c0_i32_0 : i32, i32
  }
  func.func @transform_5(%arg0: i32, %arg1: memref<1xi32, #tpu.memory_space<smem>>) -> (i32, i32) {
    %c0_i32 = arith.constant 0 : i32
    %c0_i32_0 = arith.constant 0 : i32
    return %arg0, %c0_i32 : i32, i32
  }
}

</mosaic_0001>

<llo_original>
// kernel: tpu_custom_call.1
$region0: #{tpu_custom_call.1}
  #allocation0 [shape = 'u32[]', space=smem, size = 0x4, offset = 0x4, fixed_abs, tag = 'smem constant byte address 0x4 - core index']
  #allocation1 [shape = 'u32[144,128]{1,0:T(1,128)}', space=vmem, size = 0x12000, scoped, tag = 'internal scratch']
  #allocation2 [shape = 's32[1]{0}', space=sflag, size = 0x4, scoped, tag = 'scoped memory for tpu_custom_call.1']
  #allocation3 [shape = 's32[1]{0:T(128)S(6)}', space=smem, size = 0x200, scoped, tag = 'prefetched SMEM operand 0']
  %s0 = inlined_call_operand.<no memory space> [shape: s32[1], index: 0, kind: input, shape index: {}]
  %s1 = inlined_call_operand.hbm [shape: f32[2,784], index: 1, kind: input, shape index: {}]
  %s2 = inlined_call_operand.hbm [shape: bf16[784,128], index: 2, kind: input, shape index: {}]
  %s3 = inlined_call_operand.vmem [shape: f32[1,128], index: 3, kind: input, shape index: {}]
  %s4 = inlined_call_operand.hbm [shape: bf16[128,128], index: 4, kind: input, shape index: {}]
  %s5 = inlined_call_operand.vmem [shape: f32[1,128], index: 5, kind: input, shape index: {}]
  %s6 = inlined_call_operand.hbm [shape: f32[2,10], index: 6, kind: output, shape index: {}]
  %s7 = sld [smem:[#allocation0]]
  $region42: #{tpu_custom_call.1} parent=0
    _
  %s9 = ssub.s32 1, %s7
  %s10 = scalar_select 0, %s9, %s7
  %11 = sst [smem:[#allocation3]] %s0
  $region1: #{tpu_custom_call.1} parent=0
    #allocation4 [shape = 'u8[7168]{0}', space=vmem, size = 0x1c00, scoped, tag = 'input window, operand 1, single buffered']
    #allocation5 [shape = 's32[1]{0}', space=sflag, size = 0x4, scoped, tag = 'scoped memory for tpu_custom_call.1']
    #allocation6 [shape = 's32[1]{0}', space=sflag, size = 0x4, scoped, tag = 'scoped memory for tpu_custom_call.1']
    #allocation7 [shape = 'u8[200704]{0}', space=vmem, size = 0x31000, scoped, tag = 'input window, operand 2, single buffered']
    #allocation8 [shape = 's32[1]{0}', space=sflag, size = 0x4, scoped, tag = 'scoped memory for tpu_custom_call.1']
    #allocation9 [shape = 'u8[32768]{0}', space=vmem, size = 0x8000, scoped, tag = 'input window, operand 4, single buffered']
    #allocation10 [shape = 'u8[1024]{0}', space=vmem, size = 0x400, scoped, tag = 'output window, operand 0, single buffered']
    %12 = vsyncpa [#allocation5], 0
    %13 = vsyncpa [#allocation8], 0
    %14 = vsyncpa [#allocation6], 0
    // Predicated region
    $region2: #{tpu_custom_call.1} parent=1 // pred_check
      _
    $region3: #{tpu_custom_call.1} parent=1 // pred_check_branch
      %16 = sbr.rel (0) target = $region5
    $region4: #{tpu_custom_call.1} parent=1 // pred_region
      %s18 = ssub.s32 224, 224
      %19 = vsyncadd [#allocation5], %s18
      %s21 = sshll.u32 [#allocation4], 4
      %s22 = int_to_ptr.vmem [resolvable:$true] %s21
      %24 = dma.hbm_to_vmem [thread:$0]  %s1, 224, %s22, [#allocation5]
    $region5: #{tpu_custom_call.1} parent=1 // pred_fallthru
      _
    // Predicated region
    $region6: #{tpu_custom_call.1} parent=1 // pred_check
      _
    $region7: #{tpu_custom_call.1} parent=1 // pred_check_branch
      %26 = sbr.rel (0) target = $region9
    $region8: #{tpu_custom_call.1} parent=1 // pred_region
      %s28 = ssub.s32 6272, 6272
      %29 = vsyncadd [#allocation8], %s28
      %s30 = sshll.u32 [#allocation7], 4
      %s31 = int_to_ptr.vmem [resolvable:$true] %s30
      %36 = dma.hbm_to_vmem [thread:$0]  %s2, 6272, %s31, [#allocation8], 64, 64, 4
    $region9: #{tpu_custom_call.1} parent=1 // pred_fallthru
      _
    // Predicated region
    $region10: #{tpu_custom_call.1} parent=1 // pred_check
      _
    $region11: #{tpu_custom_call.1} parent=1 // pred_check_branch
      %38 = sbr.rel (0) target = $region13
    $region12: #{tpu_custom_call.1} parent=1 // pred_region
      _
    $region13: #{tpu_custom_call.1} parent=1 // pred_fallthru
      _
    // Predicated region
    $region14: #{tpu_custom_call.1} parent=1 // pred_check
      _
    $region15: #{tpu_custom_call.1} parent=1 // pred_check_branch
      %40 = sbr.rel (0) target = $region17
    $region16: #{tpu_custom_call.1} parent=1 // pred_region
      %s42 = ssub.s32 1024, 1024
      %43 = vsyncadd [#allocation8], %s42
      %s44 = sshll.u32 [#allocation9], 4
      %s45 = int_to_ptr.vmem [resolvable:$true] %s44
      %50 = dma.hbm_to_vmem [thread:$0]  %s4, 1024, %s45, [#allocation8], 64, 64, 4
    $region17: #{tpu_custom_call.1} parent=1 // pred_fallthru
      _
    // Predicated region
    $region18: #{tpu_custom_call.1} parent=1 // pred_check
      _
    $region19: #{tpu_custom_call.1} parent=1 // pred_check_branch
      %52 = sbr.rel (0) target = $region21
    $region20: #{tpu_custom_call.1} parent=1 // pred_region
      _
    $region21: #{tpu_custom_call.1} parent=1 // pred_fallthru
      _
    // Predicated region
    $region22: #{tpu_custom_call.1} parent=1 // pred_check
      _
    $region23: #{tpu_custom_call.1} parent=1 // pred_check_branch
      %54 = sbr.rel (0) target = $region25
    $region24: #{tpu_custom_call.1} parent=1 // pred_region
      %55 = dma.done [#allocation5], 224
    $region25: #{tpu_custom_call.1} parent=1 // pred_fallthru
      _
    // Predicated region
    $region26: #{tpu_custom_call.1} parent=1 // pred_check
      _
    $region27: #{tpu_custom_call.1} parent=1 // pred_check_branch
      %57 = sbr.rel (0) target = $region29
    $region28: #{tpu_custom_call.1} parent=1 // pred_region
      %58 = dma.done [#allocation8], 6272
    $region29: #{tpu_custom_call.1} parent=1 // pred_fallthru
      _
    // Predicated region
    $region30: #{tpu_custom_call.1} parent=1 // pred_check
      _
    $region31: #{tpu_custom_call.1} parent=1 // pred_check_branch
      %60 = sbr.rel (0) target = $region33
    $region32: #{tpu_custom_call.1} parent=1 // pred_region
      %61 = dma.done [#allocation8], 1024
    $region33: #{tpu_custom_call.1} parent=1 // pred_fallthru
      _
    %v63 = vld [vmem:[#allocation4] sm:$0xff]
    %v64 = vld [vmem:[#allocation4 + $0x8] sm:$0x3f]
    %v67 = vcombine.high %v63, %v63
    %v69 = vunpack.c.l.s4 1983009808
    %v70 = vunpack.c.0.s8 %v69
    %v71 = vlaneseq
    %v72 = vshrl.u32 %v71, 7
    %v73 = vsub.s32 %v70, %v72
    %v74 = vrot.slane %v63, %v73
    %v76 = vunpack.c.l.s4 1983009808
    %v77 = vunpack.c.0.s8 %v76
    %v78 = vlaneseq
    %v79 = vshrl.u32 %v78, 7
    %v80 = vsub.s32 %v77, %v79
    %v81 = vrot.slane %v67, %v80
    %v82 = vcombine.high %v74, %v74
    %v83 = vcombine.high %v81, %v81
    %v84 = vcombine.high %v64, %v64
    %v86 = vunpack.c.l.s4 1983009808
    %v87 = vunpack.c.0.s8 %v86
    %v88 = vlaneseq
    %v89 = vshrl.u32 %v88, 7
    %v90 = vsub.s32 %v87, %v89
    %v91 = vrot.slane %v64, %v90
    %v93 = vunpack.c.l.s4 1983009808
    %v94 = vunpack.c.0.s8 %v93
    %v95 = vlaneseq
    %v96 = vshrl.u32 %v95, 7
    %v97 = vsub.s32 %v94, %v96
    %v98 = vrot.slane %v84, %v97
    %v99 = vcombine.high %v91, %v91
    %v107 = vpack.c.bf16 %v74, %v74
    %v108 = vpack.c.bf16 %v82, %v82
    %v109 = vpack.c.bf16 %v81, %v81
    %v110 = vpack.c.bf16 %v83, %v83
    %v111 = vpack.c.bf16 %v91, %v91
    %v112 = vpack.c.bf16 %v99, %v99
    %v113 = vpack.c.bf16 %v98, %v98
    %v114 = vld [vmem:[#allocation7] sm:$0xf]
    %v115 = vld [vmem:[#allocation7 + $0x4] sm:$0xf]
    %v116 = vld [vmem:[#allocation7 + $0x8] sm:$0xf]
    %v117 = vld [vmem:[#allocation7 + $0xc] sm:$0xf]
    %v118 = vld [vmem:[#allocation7 + $0x10] sm:$0xf]
    %v119 = vld [vmem:[#allocation7 + $0x14] sm:$0xf]
    %v120 = vld [vmem:[#allocation7 + $0x18] sm:$0xf]
    %v121 = vld [vmem:[#allocation7 + $0x1c] sm:$0xf]
    %v122 = vld [vmem:[#allocation7 + $0x20] sm:$0xf]
    %v123 = vld [vmem:[#allocation7 + $0x24] sm:$0xf]
    %v124 = vld [vmem:[#allocation7 + $0x28] sm:$0xf]
    %v125 = vld [vmem:[#allocation7 + $0x2c] sm:$0xf]
    %v126 = vld [vmem:[#allocation7 + $0x30] sm:$0xf]
    %v127 = vld [vmem:[#allocation7 + $0x34] sm:$0xf]
    %v128 = vld [vmem:[#allocation7 + $0x38] sm:$0xf]
    %v129 = vld [vmem:[#allocation7 + $0x3c] sm:$0xf]
    %v130 = vld [vmem:[#allocation7 + $0x40] sm:$0xf]
    %v131 = vld [vmem:[#allocation7 + $0x44] sm:$0xf]
    %v132 = vld [vmem:[#allocation7 + $0x48] sm:$0xf]
    %v133 = vld [vmem:[#allocation7 + $0x4c] sm:$0xf]
    %v134 = vld [vmem:[#allocation7 + $0x50] sm:$0xf]
    %v135 = vld [vmem:[#allocation7 + $0x54] sm:$0xf]
    %v136 = vld [vmem:[#allocation7 + $0x58] sm:$0xf]
    %v137 = vld [vmem:[#allocation7 + $0x5c] sm:$0xf]
    %v138 = vld [vmem:[#allocation7 + $0x60] sm:$0xf]
    %v139 = vld [vmem:[#allocation7 + $0x64] sm:$0xf]
    %v140 = vld [vmem:[#allocation7 + $0x68] sm:$0xf]
    %v141 = vld [vmem:[#allocation7 + $0x6c] sm:$0xf]
    %v142 = vld [vmem:[#allocation7 + $0x70] sm:$0xf]
    %v143 = vld [vmem:[#allocation7 + $0x74] sm:$0xf]
    %v144 = vld [vmem:[#allocation7 + $0x78] sm:$0xf]
    %v145 = vld [vmem:[#allocation7 + $0x7c] sm:$0xf]
    %v146 = vld [vmem:[#allocation7 + $0x80] sm:$0xf]
    %v147 = vld [vmem:[#allocation7 + $0x84] sm:$0xf]
    %v148 = vld [vmem:[#allocation7 + $0x88] sm:$0xf]
    %v149 = vld [vmem:[#allocation7 + $0x8c] sm:$0xf]
    %v150 = vld [vmem:[#allocation7 + $0x90] sm:$0xf]
    %v151 = vld [vmem:[#allocation7 + $0x94] sm:$0xf]
    %v152 = vld [vmem:[#allocation7 + $0x98] sm:$0xf]
    %v153 = vld [vmem:[#allocation7 + $0x9c] sm:$0xf]
    %v154 = vld [vmem:[#allocation7 + $0xa0] sm:$0xf]
    %v155 = vld [vmem:[#allocation7 + $0xa4] sm:$0xf]
    %v156 = vld [vmem:[#allocation7 + $0xa8] sm:$0xf]
    %v157 = vld [vmem:[#allocation7 + $0xac] sm:$0xf]
    %v158 = vld [vmem:[#allocation7 + $0xb0] sm:$0xf]
    %v159 = vld [vmem:[#allocation7 + $0xb4] sm:$0xf]
    %v160 = vld [vmem:[#allocation7 + $0xb8] sm:$0xf]
    %v161 = vld [vmem:[#allocation7 + $0xbc] sm:$0xf]
    %v162 = vld [vmem:[#allocation7 + $0xc0] sm:$0xf]
    %v163 = vld [vmem:[#allocation7 + $0xc4] sm:$0xf]
    %v164 = vld [vmem:[#allocation7 + $0xc8] sm:$0xf]
    %v165 = vld [vmem:[#allocation7 + $0xcc] sm:$0xf]
    %v166 = vld [vmem:[#allocation7 + $0xd0] sm:$0xf]
    %v167 = vld [vmem:[#allocation7 + $0xd4] sm:$0xf]
    %v168 = vld [vmem:[#allocation7 + $0xd8] sm:$0xf]
    %v169 = vld [vmem:[#allocation7 + $0xdc] sm:$0xf]
    %v170 = vld [vmem:[#allocation7 + $0xe0] sm:$0xf]
    %v171 = vld [vmem:[#allocation7 + $0xe4] sm:$0xf]
    %v172 = vld [vmem:[#allocation7 + $0xe8] sm:$0xf]
    %v173 = vld [vmem:[#allocation7 + $0xec] sm:$0xf]
    %v174 = vld [vmem:[#allocation7 + $0xf0] sm:$0xf]
    %v175 = vld [vmem:[#allocation7 + $0xf4] sm:$0xf]
    %v176 = vld [vmem:[#allocation7 + $0xf8] sm:$0xf]
    %v177 = vld [vmem:[#allocation7 + $0xfc] sm:$0xf]
    %v178 = vld [vmem:[#allocation7 + $0x100] sm:$0xf]
    %v179 = vld [vmem:[#allocation7 + $0x104] sm:$0xf]
    %v180 = vld [vmem:[#allocation7 + $0x108] sm:$0xf]
    %v181 = vld [vmem:[#allocation7 + $0x10c] sm:$0xf]
    %v182 = vld [vmem:[#allocation7 + $0x110] sm:$0xf]
    %v183 = vld [vmem:[#allocation7 + $0x114] sm:$0xf]
    %v184 = vld [vmem:[#allocation7 + $0x118] sm:$0xf]
    %v185 = vld [vmem:[#allocation7 + $0x11c] sm:$0xf]
    %v186 = vld [vmem:[#allocation7 + $0x120] sm:$0xf]
    %v187 = vld [vmem:[#allocation7 + $0x124] sm:$0xf]
    %v188 = vld [vmem:[#allocation7 + $0x128] sm:$0xf]
    %v189 = vld [vmem:[#allocation7 + $0x12c] sm:$0xf]
    %v190 = vld [vmem:[#allocation7 + $0x130] sm:$0xf]
    %v191 = vld [vmem:[#allocation7 + $0x134] sm:$0xf]
    %v192 = vld [vmem:[#allocation7 + $0x138] sm:$0xf]
    %v193 = vld [vmem:[#allocation7 + $0x13c] sm:$0xf]
    %v194 = vld [vmem:[#allocation7 + $0x140] sm:$0xf]
    %v195 = vld [vmem:[#allocation7 + $0x144] sm:$0xf]
    %v196 = vld [vmem:[#allocation7 + $0x148] sm:$0xf]
    %v197 = vld [vmem:[#allocation7 + $0x14c] sm:$0xf]
    %v198 = vld [vmem:[#allocation7 + $0x150] sm:$0xf]
    %v199 = vld [vmem:[#allocation7 + $0x154] sm:$0xf]
    %v200 = vld [vmem:[#allocation7 + $0x158] sm:$0xf]
    %v201 = vld [vmem:[#allocation7 + $0x15c] sm:$0xf]
    %v202 = vld [vmem:[#allocation7 + $0x160] sm:$0xf]
    %v203 = vld [vmem:[#allocation7 + $0x164] sm:$0xf]
    %v204 = vld [vmem:[#allocation7 + $0x168] sm:$0xf]
    %v205 = vld [vmem:[#allocation7 + $0x16c] sm:$0xf]
    %v206 = vld [vmem:[#allocation7 + $0x170] sm:$0xf]
    %v207 = vld [vmem:[#allocation7 + $0x174] sm:$0xf]
    %v208 = vld [vmem:[#allocation7 + $0x178] sm:$0xf]
    %v209 = vld [vmem:[#allocation7 + $0x17c] sm:$0xf]
    %v210 = vld [vmem:[#allocation7 + $0x180] sm:$0xf]
    %v211 = vld [vmem:[#allocation7 + $0x184] sm:$0xf]
    %v212 = vld [vmem:[%s3] sm:$0x1]
    %v214 = vlaneseq
    %v215 = vshrl.u32 %v214, 7
    %v216 = vsub.s32 0, %v215
    %v217 = vrot.slane %v212, %v216
    %v317 = vunpack.c.l.b16 %v114
    %v318 = vunpack.c.l.b16 %v115
    %v319 = vunpack.c.l.b16 %v116
    %v320 = vunpack.c.l.b16 %v117
    %v321 = vunpack.c.l.b16 %v118
    %v322 = vunpack.c.l.b16 %v119
    %v323 = vunpack.c.l.b16 %v120
    %v324 = vunpack.c.l.b16 %v121
    %v325 = vunpack.c.l.b16 %v122
    %v326 = vunpack.c.l.b16 %v123
    %v327 = vunpack.c.l.b16 %v124
    %v328 = vunpack.c.l.b16 %v125
    %v329 = vunpack.c.l.b16 %v126
    %v330 = vunpack.c.l.b16 %v127
    %v331 = vunpack.c.l.b16 %v128
    %v332 = vunpack.c.l.b16 %v129
    %v333 = vunpack.c.l.b16 %v130
    %v334 = vunpack.c.l.b16 %v131
    %v335 = vunpack.c.l.b16 %v132
    %v336 = vunpack.c.l.b16 %v133
    %v337 = vunpack.c.l.b16 %v134
    %v338 = vunpack.c.l.b16 %v135
    %v339 = vunpack.c.l.b16 %v136
    %v340 = vunpack.c.l.b16 %v137
    %v341 = vunpack.c.l.b16 %v138
    %v342 = vunpack.c.l.b16 %v139
    %v343 = vunpack.c.l.b16 %v140
    %v344 = vunpack.c.l.b16 %v141
    %v345 = vunpack.c.l.b16 %v142
    %v346 = vunpack.c.l.b16 %v143
    %v347 = vunpack.c.l.b16 %v144
    %v348 = vunpack.c.l.b16 %v145
    %v349 = vunpack.c.l.b16 %v146
    %v350 = vunpack.c.l.b16 %v147
    %v351 = vunpack.c.l.b16 %v148
    %v352 = vunpack.c.l.b16 %v149
    %v353 = vunpack.c.l.b16 %v150
    %v354 = vunpack.c.l.b16 %v151
    %v355 = vunpack.c.l.b16 %v152
    %v356 = vunpack.c.l.b16 %v153
    %v357 = vunpack.c.l.b16 %v154
    %v358 = vunpack.c.l.b16 %v155
    %v359 = vunpack.c.l.b16 %v156
    %v360 = vunpack.c.l.b16 %v157
    %v361 = vunpack.c.l.b16 %v158
    %v362 = vunpack.c.l.b16 %v159
    %v363 = vunpack.c.l.b16 %v160
    %v364 = vunpack.c.l.b16 %v161
    %v365 = vunpack.c.l.b16 %v162
    %v366 = vunpack.c.l.b16 %v163
    %v367 = vunpack.c.l.b16 %v164
    %v368 = vunpack.c.l.b16 %v165
    %v369 = vunpack.c.l.b16 %v166
    %v370 = vunpack.c.l.b16 %v167
    %v371 = vunpack.c.l.b16 %v168
    %v372 = vunpack.c.l.b16 %v169
    %v373 = vunpack.c.l.b16 %v170
    %v374 = vunpack.c.l.b16 %v171
    %v375 = vunpack.c.l.b16 %v172
    %v376 = vunpack.c.l.b16 %v173
    %v377 = vunpack.c.l.b16 %v174
    %v378 = vunpack.c.l.b16 %v175
    %v379 = vunpack.c.l.b16 %v176
    %v380 = vunpack.c.l.b16 %v177
    %v381 = vunpack.c.l.b16 %v178
    %v382 = vunpack.c.l.b16 %v179
    %v383 = vunpack.c.l.b16 %v180
    %v384 = vunpack.c.l.b16 %v181
    %v385 = vunpack.c.l.b16 %v182
    %v386 = vunpack.c.l.b16 %v183
    %v387 = vunpack.c.l.b16 %v184
    %v388 = vunpack.c.l.b16 %v185
    %v389 = vunpack.c.l.b16 %v186
    %v390 = vunpack.c.l.b16 %v187
    %v391 = vunpack.c.l.b16 %v188
    %v392 = vunpack.c.l.b16 %v189
    %v393 = vunpack.c.l.b16 %v190
    %v394 = vunpack.c.l.b16 %v191
    %v395 = vunpack.c.l.b16 %v192
    %v396 = vunpack.c.l.b16 %v193
    %v397 = vunpack.c.l.b16 %v194
    %v398 = vunpack.c.l.b16 %v195
    %v399 = vunpack.c.l.b16 %v196
    %v400 = vunpack.c.l.b16 %v197
    %v401 = vunpack.c.l.b16 %v198
    %v402 = vunpack.c.l.b16 %v199
    %v403 = vunpack.c.l.b16 %v200
    %v404 = vunpack.c.l.b16 %v201
    %v405 = vunpack.c.l.b16 %v202
    %v406 = vunpack.c.l.b16 %v203
    %v407 = vunpack.c.l.b16 %v204
    %v408 = vunpack.c.l.b16 %v205
    %v409 = vunpack.c.l.b16 %v206
    %v410 = vunpack.c.l.b16 %v207
    %v411 = vunpack.c.l.b16 %v208
    %v412 = vunpack.c.l.b16 %v209
    %v413 = vunpack.c.l.b16 %v210
    %v414 = vunpack.c.l.b16 %v211
    %v415 = vpack.c.b16 %v318, %v317
    %v416 = vpack.c.b16 %v320, %v319
    %v417 = vpack.c.b16 %v322, %v321
    %v418 = vpack.c.b16 %v324, %v323
    %v419 = vpack.c.b16 %v326, %v325
    %v420 = vpack.c.b16 %v328, %v327
    %v421 = vpack.c.b16 %v330, %v329
    %v422 = vpack.c.b16 %v332, %v331
    %v423 = vpack.c.b16 %v334, %v333
    %v424 = vpack.c.b16 %v336, %v335
    %v425 = vpack.c.b16 %v338, %v337
    %v426 = vpack.c.b16 %v340, %v339
    %v427 = vpack.c.b16 %v342, %v341
    %v428 = vpack.c.b16 %v344, %v343
    %v429 = vpack.c.b16 %v346, %v345
    %v430 = vpack.c.b16 %v348, %v347
    %v431 = vpack.c.b16 %v350, %v349
    %v432 = vpack.c.b16 %v352, %v351
    %v433 = vpack.c.b16 %v354, %v353
    %v434 = vpack.c.b16 %v356, %v355
    %v435 = vpack.c.b16 %v358, %v357
    %v436 = vpack.c.b16 %v360, %v359
    %v437 = vpack.c.b16 %v362, %v361
    %v438 = vpack.c.b16 %v364, %v363
    %v439 = vpack.c.b16 %v366, %v365
    %v440 = vpack.c.b16 %v368, %v367
    %v441 = vpack.c.b16 %v370, %v369
    %v442 = vpack.c.b16 %v372, %v371
    %v443 = vpack.c.b16 %v374, %v373
    %v444 = vpack.c.b16 %v376, %v375
    %v445 = vpack.c.b16 %v378, %v377
    %v446 = vpack.c.b16 %v380, %v379
    %v447 = vpack.c.b16 %v382, %v381
    %v448 = vpack.c.b16 %v384, %v383
    %v449 = vpack.c.b16 %v386, %v385
    %v450 = vpack.c.b16 %v388, %v387
    %v451 = vpack.c.b16 %v390, %v389
    %v452 = vpack.c.b16 %v392, %v391
    %v453 = vpack.c.b16 %v394, %v393
    %v454 = vpack.c.b16 %v396, %v395
    %v455 = vpack.c.b16 %v398, %v397
    %v456 = vpack.c.b16 %v400, %v399
    %v457 = vpack.c.b16 %v402, %v401
    %v458 = vpack.c.b16 %v404, %v403
    %v459 = vpack.c.b16 %v406, %v405
    %v460 = vpack.c.b16 %v408, %v407
    %v461 = vpack.c.b16 %v410, %v409
    %v462 = vpack.c.b16 %v412, %v411
    %v463 = vpack.c.b16 %v414, %v413
    %vm513 = vcmask 130048
    %v515 = vsel %vm513, %v113, 0
    %517 = vmatprep.subr.bf16.mxu0 0
    %518 = vmatpush1.bf16.msra.mxu0 %v415
    %519 = vmatprep.subr.bf16.mxu0 0
    %520 = vmatpush1.bf16.msra.mxu0 %v416
    %521 = vmatprep.subr.bf16.mxu0 0
    %522 = vmatpush1.bf16.msra.mxu0 %v417
    %523 = vmatprep.subr.bf16.mxu0 0
    %524 = vmatpush1.bf16.msra.mxu0 %v418
    %525 = vmatprep.subr.bf16.mxu0 0
    %526 = vmatpush1.bf16.msra.mxu0 %v419
    %527 = vmatprep.subr.bf16.mxu0 0
    %528 = vmatpush1.bf16.msra.mxu0 %v420
    %529 = vmatprep.subr.bf16.mxu0 0
    %530 = vmatpush1.bf16.msra.mxu0 %v421
    %531 = vmatprep.subr.bf16.mxu0 0
    %532 = vmatpush1.bf16.msra.mxu0 %v422
    %533 = vmatprep.subr.bf16.mxu0 0
    %534 = vmatpush1.bf16.msra.mxu0 %v423
    %535 = vmatprep.subr.bf16.mxu0 0
    %536 = vmatpush1.bf16.msra.mxu0 %v424
    %537 = vmatprep.subr.bf16.mxu0 0
    %538 = vmatpush1.bf16.msra.mxu0 %v425
    %539 = vmatprep.subr.bf16.mxu0 0
    %540 = vmatpush1.bf16.msra.mxu0 %v426
    %541 = vmatprep.subr.bf16.mxu0 0
    %542 = vmatpush1.bf16.msra.mxu0 %v427
    %543 = vmatprep.subr.bf16.mxu0 0
    %544 = vmatpush1.bf16.msra.mxu0 %v428
    %545 = vmatprep.subr.bf16.mxu0 0
    %546 = vmatpush1.bf16.msra.mxu0 %v429
    %547 = vmatprep.subr.bf16.mxu0 0
    %548 = vmatpush1.bf16.msra.mxu0 %v430
    %549 = vmatprep.mubr.bf16.mxu0 %v108
    %550 = vmatmul.mubr.bf16.gmra.mrb[0].mxu0 %v107
    %v551 = vpop.f32.mrb[0].mxu0
    %v552 = vadd.f32 %v217, %v551
    %v553 = vpop.f32.mrb[0].mxu0
    %v554 = vpop.f32.mrb[0].mxu0
    %v555 = vpop.f32.mrb[0].mxu0
    %556 = vdwg.mxu0
    %557 = vmatprep.subr.bf16.mxu0 0
    %558 = vmatpush1.bf16.msra.mxu0 %v431
    %559 = vmatprep.subr.bf16.mxu0 0
    %560 = vmatpush1.bf16.msra.mxu0 %v432
    %561 = vmatprep.subr.bf16.mxu0 0
    %562 = vmatpush1.bf16.msra.mxu0 %v433
    %563 = vmatprep.subr.bf16.mxu0 0
    %564 = vmatpush1.bf16.msra.mxu0 %v434
    %565 = vmatprep.subr.bf16.mxu0 0
    %566 = vmatpush1.bf16.msra.mxu0 %v435
    %567 = vmatprep.subr.bf16.mxu0 0
    %568 = vmatpush1.bf16.msra.mxu0 %v436
    %569 = vmatprep.subr.bf16.mxu0 0
    %570 = vmatpush1.bf16.msra.mxu0 %v437
    %571 = vmatprep.subr.bf16.mxu0 0
    %572 = vmatpush1.bf16.msra.mxu0 %v438
    %573 = vmatprep.subr.bf16.mxu0 0
    %574 = vmatpush1.bf16.msra.mxu0 %v439
    %575 = vmatprep.subr.bf16.mxu0 0
    %576 = vmatpush1.bf16.msra.mxu0 %v440
    %577 = vmatprep.subr.bf16.mxu0 0
    %578 = vmatpush1.bf16.msra.mxu0 %v441
    %579 = vmatprep.subr.bf16.mxu0 0
    %580 = vmatpush1.bf16.msra.mxu0 %v442
    %581 = vmatprep.subr.bf16.mxu0 0
    %582 = vmatpush1.bf16.msra.mxu0 %v443
    %583 = vmatprep.subr.bf16.mxu0 0
    %584 = vmatpush1.bf16.msra.mxu0 %v444
    %585 = vmatprep.subr.bf16.mxu0 0
    %586 = vmatpush1.bf16.msra.mxu0 %v445
    %587 = vmatprep.subr.bf16.mxu0 0
    %588 = vmatpush1.bf16.msra.mxu0 %v446
    %589 = vmatprep.mubr.bf16.mxu0 %v110
    %590 = vmatmul.mubr.bf16.gmra.mrb[0].mxu0 %v109
    %v591 = vpop.f32.mrb[0].mxu0
    %v592 = vadd.f32 %v552, %v591
    %v593 = vpop.f32.mrb[0].mxu0
    %v594 = vpop.f32.mrb[0].mxu0
    %v595 = vpop.f32.mrb[0].mxu0
    %596 = vdwg.mxu0
    %597 = vmatprep.subr.bf16.mxu0 0
    %598 = vmatpush1.bf16.msra.mxu0 %v447
    %599 = vmatprep.subr.bf16.mxu0 0
    %600 = vmatpush1.bf16.msra.mxu0 %v448
    %601 = vmatprep.subr.bf16.mxu0 0
    %602 = vmatpush1.bf16.msra.mxu0 %v449
    %603 = vmatprep.subr.bf16.mxu0 0
    %604 = vmatpush1.bf16.msra.mxu0 %v450
    %605 = vmatprep.subr.bf16.mxu0 0
    %606 = vmatpush1.bf16.msra.mxu0 %v451
    %607 = vmatprep.subr.bf16.mxu0 0
    %608 = vmatpush1.bf16.msra.mxu0 %v452
    %609 = vmatprep.subr.bf16.mxu0 0
    %610 = vmatpush1.bf16.msra.mxu0 %v453
    %611 = vmatprep.subr.bf16.mxu0 0
    %612 = vmatpush1.bf16.msra.mxu0 %v454
    %613 = vmatprep.subr.bf16.mxu0 0
    %614 = vmatpush1.bf16.msra.mxu0 %v455
    %615 = vmatprep.subr.bf16.mxu0 0
    %616 = vmatpush1.bf16.msra.mxu0 %v456
    %617 = vmatprep.subr.bf16.mxu0 0
    %618 = vmatpush1.bf16.msra.mxu0 %v457
    %619 = vmatprep.subr.bf16.mxu0 0
    %620 = vmatpush1.bf16.msra.mxu0 %v458
    %621 = vmatprep.subr.bf16.mxu0 0
    %622 = vmatpush1.bf16.msra.mxu0 %v459
    %623 = vmatprep.subr.bf16.mxu0 0
    %624 = vmatpush1.bf16.msra.mxu0 %v460
    %625 = vmatprep.subr.bf16.mxu0 0
    %626 = vmatpush1.bf16.msra.mxu0 %v461
    %627 = vmatprep.subr.bf16.mxu0 0
    %628 = vmatpush1.bf16.msra.mxu0 %v462
    %629 = vmatprep.mubr.bf16.mxu0 %v112
    %630 = vmatmul.mubr.bf16.gmra.mrb[0].mxu0 %v111
    %v631 = vpop.f32.mrb[0].mxu0
    %v632 = vadd.f32 %v592, %v631
    %v633 = vpop.f32.mrb[0].mxu0
    %v634 = vpop.f32.mrb[0].mxu0
    %v635 = vpop.f32.mrb[0].mxu0
    %636 = vdwg.mxu0
    %637 = vmatprep.subr.bf16.mxu0 0
    %638 = vmatpush1.bf16.msra.mxu0 %v463
    %639 = vmatprep.subr.bf16.mxu0 0
    %640 = vmatpush1.bf16.msra.mxu0 0
    %641 = vmatprep.subr.bf16.mxu0 0
    %642 = vmatpush1.bf16.msra.mxu0 0
    %643 = vmatprep.subr.bf16.mxu0 0
    %644 = vmatpush1.bf16.msra.mxu0 0
    %645 = vmatprep.subr.bf16.mxu0 0
    %646 = vmatpush1.bf16.msra.mxu0 0
    %647 = vmatprep.subr.bf16.mxu0 0
    %648 = vmatpush1.bf16.msra.mxu0 0
    %649 = vmatprep.subr.bf16.mxu0 0
    %650 = vmatpush1.bf16.msra.mxu0 0
    %651 = vmatprep.subr.bf16.mxu0 0
    %652 = vmatpush1.bf16.msra.mxu0 0
    %653 = vmatprep.subr.bf16.mxu0 0
    %654 = vmatpush1.bf16.msra.mxu0 0
    %655 = vmatprep.subr.bf16.mxu0 0
    %656 = vmatpush1.bf16.msra.mxu0 0
    %657 = vmatprep.subr.bf16.mxu0 0
    %658 = vmatpush1.bf16.msra.mxu0 0
    %659 = vmatprep.subr.bf16.mxu0 0
    %660 = vmatpush1.bf16.msra.mxu0 0
    %661 = vmatprep.subr.bf16.mxu0 0
    %662 = vmatpush1.bf16.msra.mxu0 0
    %663 = vmatprep.subr.bf16.mxu0 0
    %664 = vmatpush1.bf16.msra.mxu0 0
    %665 = vmatprep.subr.bf16.mxu0 0
    %666 = vmatpush1.bf16.msra.mxu0 0
    %667 = vmatprep.subr.bf16.mxu0 0
    %668 = vmatpush1.bf16.msra.mxu0 0
    %669 = vmatprep.mubr.bf16.mxu0 0
    %670 = vmatmul.mubr.bf16.gmra.mrb[0].mxu0 %v515
    %v671 = vpop.f32.mrb[0].mxu0
    %v672 = vadd.f32 %v632, %v671
    %v673 = vpop.f32.mrb[0].mxu0
    %v674 = vpop.f32.mrb[0].mxu0
    %v675 = vpop.f32.mrb[0].mxu0
    %676 = vdwg.mxu0
    %v677 = vmax.f32 %v672, 0.0
    %v678 = vpack.c.bf16 %v677, %v677
    %v679 = vld [vmem:[#allocation9] sm:$0xf]
    %v680 = vld [vmem:[#allocation9 + $0x4] sm:$0xf]
    %v681 = vld [vmem:[#allocation9 + $0x8] sm:$0xf]
    %v682 = vld [vmem:[#allocation9 + $0xc] sm:$0xf]
    %v683 = vld [vmem:[#allocation9 + $0x10] sm:$0xf]
    %v684 = vld [vmem:[#allocation9 + $0x14] sm:$0xf]
    %v685 = vld [vmem:[#allocation9 + $0x18] sm:$0xf]
    %v686 = vld [vmem:[#allocation9 + $0x1c] sm:$0xf]
    %v687 = vld [vmem:[#allocation9 + $0x20] sm:$0xf]
    %v688 = vld [vmem:[#allocation9 + $0x24] sm:$0xf]
    %v689 = vld [vmem:[#allocation9 + $0x28] sm:$0xf]
    %v690 = vld [vmem:[#allocation9 + $0x2c] sm:$0xf]
    %v691 = vld [vmem:[#allocation9 + $0x30] sm:$0xf]
    %v692 = vld [vmem:[#allocation9 + $0x34] sm:$0xf]
    %v693 = vld [vmem:[#allocation9 + $0x38] sm:$0xf]
    %v694 = vld [vmem:[#allocation9 + $0x3c] sm:$0xf]
    %v695 = vld [vmem:[%s5] sm:$0x1]
    %v697 = vlaneseq
    %v698 = vshrl.u32 %v697, 7
    %v699 = vsub.s32 0, %v698
    %v700 = vrot.slane %v695, %v699
    %v718 = vunpack.c.l.b16 %v679
    %v719 = vunpack.c.l.b16 %v680
    %v720 = vunpack.c.l.b16 %v681
    %v721 = vunpack.c.l.b16 %v682
    %v722 = vunpack.c.l.b16 %v683
    %v723 = vunpack.c.l.b16 %v684
    %v724 = vunpack.c.l.b16 %v685
    %v725 = vunpack.c.l.b16 %v686
    %v726 = vunpack.c.l.b16 %v687
    %v727 = vunpack.c.l.b16 %v688
    %v728 = vunpack.c.l.b16 %v689
    %v729 = vunpack.c.l.b16 %v690
    %v730 = vunpack.c.l.b16 %v691
    %v731 = vunpack.c.l.b16 %v692
    %v732 = vunpack.c.l.b16 %v693
    %v733 = vunpack.c.l.b16 %v694
    %v734 = vpack.c.b16 %v719, %v718
    %v735 = vpack.c.b16 %v721, %v720
    %v736 = vpack.c.b16 %v723, %v722
    %v737 = vpack.c.b16 %v725, %v724
    %v738 = vpack.c.b16 %v727, %v726
    %v739 = vpack.c.b16 %v729, %v728
    %v740 = vpack.c.b16 %v731, %v730
    %v741 = vpack.c.b16 %v733, %v732
    %750 = vmatprep.subr.bf16.mxu0 0
    %751 = vmatpush1.bf16.msra.mxu0 %v734
    %752 = vmatprep.subr.bf16.mxu0 0
    %753 = vmatpush1.bf16.msra.mxu0 %v735
    %754 = vmatprep.subr.bf16.mxu0 0
    %755 = vmatpush1.bf16.msra.mxu0 %v736
    %756 = vmatprep.subr.bf16.mxu0 0
    %757 = vmatpush1.bf16.msra.mxu0 %v737
    %758 = vmatprep.subr.bf16.mxu0 0
    %759 = vmatpush1.bf16.msra.mxu0 %v738
    %760 = vmatprep.subr.bf16.mxu0 0
    %761 = vmatpush1.bf16.msra.mxu0 %v739
    %762 = vmatprep.subr.bf16.mxu0 0
    %763 = vmatpush1.bf16.msra.mxu0 %v740
    %764 = vmatprep.subr.bf16.mxu0 0
    %765 = vmatpush1.bf16.msra.mxu0 %v741
    %766 = vmatprep.subr.bf16.mxu0 0
    %767 = vmatpush1.bf16.msra.mxu0 0
    %768 = vmatprep.subr.bf16.mxu0 0
    %769 = vmatpush1.bf16.msra.mxu0 0
    %770 = vmatprep.subr.bf16.mxu0 0
    %771 = vmatpush1.bf16.msra.mxu0 0
    %772 = vmatprep.subr.bf16.mxu0 0
    %773 = vmatpush1.bf16.msra.mxu0 0
    %774 = vmatprep.subr.bf16.mxu0 0
    %775 = vmatpush1.bf16.msra.mxu0 0
    %776 = vmatprep.subr.bf16.mxu0 0
    %777 = vmatpush1.bf16.msra.mxu0 0
    %778 = vmatprep.subr.bf16.mxu0 0
    %779 = vmatpush1.bf16.msra.mxu0 0
    %780 = vmatprep.subr.bf16.mxu0 0
    %781 = vmatpush1.bf16.msra.mxu0 0
    %782 = vmatprep.mubr.bf16.mxu0 0
    %783 = vmatmul.mubr.bf16.gmra.mrb[0].mxu0 %v678
    %v784 = vpop.f32.mrb[0].mxu0
    %v785 = vadd.f32 %v700, %v784
    %v786 = vpop.f32.mrb[0].mxu0
    %v787 = vpop.f32.mrb[0].mxu0
    %v788 = vpop.f32.mrb[0].mxu0
    %789 = vdwg.mxu0
    %vm790 = vcmask 1041408
    %v791 = vsel %vm790, %v785, -inf
    %792 = vmax.xlane.f32.xlu0 %v791
    %v793 = vpop.xlane.xlu0 %792
    %v794 = vsub.f32 %v785, %v793
    %v795 = vmul.f32 %v794, 1.442695
    %v796 = vpow.pop %v795
    %v797 = vsel %vm790, %v796, 0.0
    %798 = vadd.xlane.f32.xlu0 %v797
    %v799 = vpop.xlane.xlu0 %798
    %v800 = vrcp.pop %v799
    %v801 = vmul.f32 %v796, %v800
    %vm802 = vcmask 74752
    %803 = vst.msk [vmem:[#allocation10] sm:$0x3] %vm802, %v801
    // Predicated region
    $region34: #{tpu_custom_call.1} parent=1 // pred_check
      _
    $region35: #{tpu_custom_call.1} parent=1 // pred_check_branch
      %805 = sbr.rel (0) target = $region37
    $region36: #{tpu_custom_call.1} parent=1 // pred_region
      %s807 = ssub.s32 32, 32
      %808 = vsyncadd [#allocation6], %s807
      %s810 = sshll.u32 [#allocation10], 4
      %s811 = int_to_ptr.vmem [resolvable:$true] %s810
      %813 = dma.vmem_to_hbm [thread:$0]  %s811, 32, %s6, [#allocation6]
    $region37: #{tpu_custom_call.1} parent=1 // pred_fallthru
      _
    // Predicated region
    $region38: #{tpu_custom_call.1} parent=1 // pred_check
      _
    $region39: #{tpu_custom_call.1} parent=1 // pred_check_branch
      %815 = sbr.rel (0) target = $region41
    $region40: #{tpu_custom_call.1} parent=1 // pred_region
      %816 = dma.done [#allocation6], 32
    $region41: #{tpu_custom_call.1} parent=1 // pred_fallthru
      _
    %817 = vsyncpa [#allocation5], 1
    %818 = vsyncpa [#allocation8], 1
    %819 = vsyncpa [#allocation6], 1

</llo_original>
